<compile_context>
chip_gen: v7x
topology: tpu7x:2x2x1
jax: 0.10.0
libtpu: 0.0.40
codegen_flags: <defaults>
</compile_context>

<pallas_src>
import jax
import jax.numpy as jnp
from jax.experimental import pallas as pl
from jax.experimental.pallas import tpu as pltpu

NUM_HIDDEN_LAYERS = 3
INPUT_SIZE = 1          # x = np.ravel(ms_x).reshape(-1, 1) -> single feature
HIDDEN_SIZE = 32
BATCH = 64              # number of collocation points (any value works)

_LANE = 128             # lane width: batch tiles are multiples of this
_MAX_TN = 512           # batch-tile upper bound for large collocation sets


def _round_up(v, m):
    return ((v + m - 1) // m) * m


def mlp_kernel(x_ref, w_in_ref, b_in_ref, w_h_ref, b_h_ref,
               w_out_ref, b_out_ref, o_ref):
    # x_ref:     (INPUT_SIZE, TN)        batch on the lane axis
    # w_in_ref:  (HIDDEN, INPUT_SIZE)    PyTorch (out_features, in_features)
    # b_in_ref:  (HIDDEN, 1)
    # w_h_ref:   (L, HIDDEN, HIDDEN)     PyTorch (out_features, in_features)
    # b_h_ref:   (L, HIDDEN, 1)
    # w_out_ref: (HIDDEN, 1)             output-layer weights as a column
    # b_out_ref: (1,) in SMEM            scalar output bias
    # o_ref:     (1, TN)
    x = x_ref[...]

    # Input layer.  For INPUT_SIZE == 1 the matmul is a degenerate K=1 outer
    # product: keep it on the VPU as a broadcast multiply instead of an MXU
    # push + result-FIFO pop at the head of the dependency chain.
    if w_in_ref.shape[1] == 1:
        h = w_in_ref[...] * x + b_in_ref[...]          # (H,1)*(1,TN)+(H,1) -> (H,TN)
    else:
        h = jnp.dot(w_in_ref[...], x,
                    preferred_element_type=jnp.float32) + b_in_ref[...]
    out = h * jnp.tanh(h)                              # torch.mul(lin(x), tanh(lin(x)))

    # Hidden layers: (H,H) @ (H,TN) on the MXU, statically unrolled (L small).
    num_hidden = w_h_ref.shape[0]
    for i in range(num_hidden):
        out = jnp.tanh(
            jnp.dot(w_h_ref[i], out,
                    preferred_element_type=jnp.float32) + b_h_ref[i])

    # Output layer (N=1): VPU multiply + sublane (XLU) reduce; avoids a
    # degenerate MXU op + FIFO pop right before the store.
    y = jnp.sum(w_out_ref[...] * out, axis=0, keepdims=True) + b_out_ref[0]
    o_ref[...] = y                                     # lane-dense (1, TN) store


def net_forward(x, params):
    """x: (N, INPUT_SIZE) row-major. Returns (N, 1), like the PyTorch module."""
    w_in, b_in, w_h, b_h, w_out, b_out = params
    n, in_size = x.shape

    # Pad the batch to a lane-dense multiple of 128; tile at <= 512 columns so
    # large collocation sets still pipeline with all weights resident.
    n_pad = _round_up(n, _LANE)
    tn = min(_MAX_TN, n_pad)
    n_pad = _round_up(n_pad, tn)
    grid = (n_pad // tn,)

    # Feature-major input: (INPUT_SIZE, n_pad) with zero-padded columns
    # (padded columns are computed but sliced away from the output).
    x_t = jnp.zeros((in_size, n_pad), jnp.float32).at[:, :n].set(x.T)

    full = lambda a: pl.BlockSpec(a.shape, lambda i: (0,) * a.ndim)

    y_t = pl.pallas_call(
        mlp_kernel,
        out_shape=jax.ShapeDtypeStruct((1, n_pad), jnp.float32),
        grid=grid,
        in_specs=[
            pl.BlockSpec((in_size, tn), lambda i: (0, i)),      # x tile, batch on lanes
            full(w_in),                                         # weights fully resident
            full(b_in),
            full(w_h),
            full(b_h),
            full(w_out),
            pl.BlockSpec(memory_space=pltpu.MemorySpace.SMEM),  # scalar output bias
        ],
        out_specs=pl.BlockSpec((1, tn), lambda i: (0, i)),
        compiler_params=pltpu.CompilerParams(
            dimension_semantics=(
                ("parallel",) if grid[0] > 1 else ("arbitrary",))),
    )(x_t, w_in, b_in, w_h, b_h, w_out, b_out)

    return y_t[:, :n].T                                         # (N, 1)


def init_params(key, num_hidden_layers, input_size, hidden_size):
    """Deterministic init mimicking nn.Linear's U(-1/sqrt(fan_in), 1/sqrt(fan_in)).

    Weights are stored in PyTorch (out_features, in_features) layout because
    the kernel is feature-major and computes W @ act directly.
    """
    keys = jax.random.split(key, 2 * (num_hidden_layers + 2))
    k = iter(keys)

    def lin(kw, kb, fan_in, fan_out):
        bound = 1.0 / float(fan_in) ** 0.5
        w = jax.random.uniform(kw, (fan_out, fan_in), jnp.float32, -bound, bound)
        b = jax.random.uniform(kb, (fan_out, 1), jnp.float32, -bound, bound)
        return w, b

    w_in, b_in = lin(next(k), next(k), input_size, hidden_size)   # (H,I), (H,1)
    w_hs, b_hs = [], []
    for _ in range(num_hidden_layers):
        w, b = lin(next(k), next(k), hidden_size, hidden_size)
        w_hs.append(w)
        b_hs.append(b)
    w_h = jnp.stack(w_hs, axis=0)                                 # (L,H,H)
    b_h = jnp.stack(b_hs, axis=0)                                 # (L,H,1)
    w_o, b_o = lin(next(k), next(k), hidden_size, 1)              # (1,H), (1,1)
    w_out = w_o.T                                                 # (H,1) column
    b_out = b_o.reshape((1,))                                     # scalar, SMEM-bound
    return w_in, b_in, w_h, b_h, w_out, b_out


def reference_forward(x, params):
    """Pure-JAX reference identical to the PyTorch forward."""
    w_in, b_in, w_h, b_h, w_out, b_out = params
    h = x @ w_in.T + b_in[:, 0]
    out = h * jnp.tanh(h)
    for i in range(w_h.shape[0]):
        out = jnp.tanh(out @ w_h[i].T + b_h[i, :, 0])
    return out @ w_out + b_out                                    # (N,1)


if __name__ == "__main__":
    key = jax.random.PRNGKey(0)
    k_param, k_x = jax.random.split(key)

    params = init_params(k_param, NUM_HIDDEN_LAYERS, INPUT_SIZE, HIDDEN_SIZE)
    x = jax.random.uniform(k_x, (BATCH, INPUT_SIZE), jnp.float32)

    y = net_forward(x, params)
    y = jax.block_until_ready(y)

    y_ref = reference_forward(x, params)
    assert y.shape == (BATCH, 1)
    assert jnp.allclose(y, y_ref, atol=1e-5, rtol=1e-5)

    print("KERNEL_OK")
</pallas_src>

<mosaic_0001>
module attributes {stable_mosaic.version = 11 : i64} {
  func.func @mlp_kernel(%arg0: i32, %arg1: memref<1x128xf32, #tpu.memory_space<vmem>>, %arg2: memref<32x1xf32, #tpu.memory_space<vmem>>, %arg3: memref<32x1xf32, #tpu.memory_space<vmem>>, %arg4: memref<3x32x32xf32, #tpu.memory_space<vmem>>, %arg5: memref<3x32x1xf32, #tpu.memory_space<vmem>>, %arg6: memref<32x1xf32, #tpu.memory_space<vmem>>, %arg7: memref<1xf32, #tpu.memory_space<smem>>, %arg8: memref<1x128xf32, #tpu.memory_space<vmem>>) attributes {dimension_semantics = [#tpu.dimension_semantics<arbitrary>], iteration_bounds = array<i64: 1>, scalar_prefetch = 0 : i64, scratch_operands = 0 : i64, tpu.core_type = #tpu.core_type<tc>, window_params = [{transform_indices = @transform_0, window_bounds = array<i64: 1, 128>}, {pipeline_mode = #tpu.pipeline_mode<synchronous>, transform_indices = @transform_1, window_bounds = array<i64: 32, 1>}, {pipeline_mode = #tpu.pipeline_mode<synchronous>, transform_indices = @transform_2, window_bounds = array<i64: 32, 1>}, {pipeline_mode = #tpu.pipeline_mode<synchronous>, transform_indices = @transform_3, window_bounds = array<i64: 3, 32, 32>}, {pipeline_mode = #tpu.pipeline_mode<synchronous>, transform_indices = @transform_4, window_bounds = array<i64: 3, 32, 1>}, {pipeline_mode = #tpu.pipeline_mode<synchronous>, transform_indices = @transform_5, window_bounds = array<i64: 32, 1>}, {transform_indices = @transform_6, window_bounds = array<i64: 1>}, {transform_indices = @transform_7, window_bounds = array<i64: 1, 128>}]} {
    %c0 = arith.constant 0 : index
    %c0_0 = arith.constant 0 : index
    %0 = vector.load %arg1[%c0, %c0_0] : memref<1x128xf32, #tpu.memory_space<vmem>>, vector<1x128xf32>
    %c0_1 = arith.constant 0 : index
    %c0_2 = arith.constant 0 : index
    %1 = vector.load %arg2[%c0_1, %c0_2] : memref<32x1xf32, #tpu.memory_space<vmem>>, vector<32x1xf32>
    %2 = vector.broadcast %1 : vector<32x1xf32> to vector<32x128xf32>
    %3 = vector.broadcast %0 : vector<1x128xf32> to vector<32x128xf32>
    %4 = arith.mulf %2, %3 : vector<32x128xf32>
    %c0_3 = arith.constant 0 : index
    %c0_4 = arith.constant 0 : index
    %5 = vector.load %arg3[%c0_3, %c0_4] : memref<32x1xf32, #tpu.memory_space<vmem>>, vector<32x1xf32>
    %6 = vector.broadcast %5 : vector<32x1xf32> to vector<32x128xf32>
    %7 = arith.addf %4, %6 : vector<32x128xf32>
    %8 = math.tanh %7 : vector<32x128xf32>
    %9 = arith.mulf %7, %8 : vector<32x128xf32>
    %c0_5 = arith.constant 0 : index
    %c0_6 = arith.constant 0 : index
    %c0_7 = arith.constant 0 : index
    %10 = vector.load %arg4[%c0_5, %c0_6, %c0_7] : memref<3x32x32xf32, #tpu.memory_space<vmem>>, vector<1x32x32xf32>
    %11 = vector.shape_cast %10 : vector<1x32x32xf32> to vector<32x32xf32>
    %cst = arith.constant dense<0.000000e+00> : vector<32x128xf32>
    %12 = tpu.matmul %11, %9, %cst {dimension_numbers = #tpu.dot_dimension_numbers<[1], [0], [0], [1], [0, 0, 1, 1], [], []>} : vector<32x32xf32>, vector<32x128xf32>, vector<32x128xf32> -> vector<32x128xf32>
    %c0_8 = arith.constant 0 : index
    %c0_9 = arith.constant 0 : index
    %c0_10 = arith.constant 0 : index
    %13 = vector.load %arg5[%c0_8, %c0_9, %c0_10] : memref<3x32x1xf32, #tpu.memory_space<vmem>>, vector<1x32x1xf32>
    %14 = vector.shape_cast %13 : vector<1x32x1xf32> to vector<32x1xf32>
    %15 = vector.broadcast %14 : vector<32x1xf32> to vector<32x128xf32>
    %16 = arith.addf %12, %15 : vector<32x128xf32>
    %17 = math.tanh %16 : vector<32x128xf32>
    %c1 = arith.constant 1 : index
    %c0_11 = arith.constant 0 : index
    %c0_12 = arith.constant 0 : index
    %18 = vector.load %arg4[%c1, %c0_11, %c0_12] : memref<3x32x32xf32, #tpu.memory_space<vmem>>, vector<1x32x32xf32>
    %19 = vector.shape_cast %18 : vector<1x32x32xf32> to vector<32x32xf32>
    %cst_13 = arith.constant dense<0.000000e+00> : vector<32x128xf32>
    %20 = tpu.matmul %19, %17, %cst_13 {dimension_numbers = #tpu.dot_dimension_numbers<[1], [0], [0], [1], [0, 0, 1, 1], [], []>} : vector<32x32xf32>, vector<32x128xf32>, vector<32x128xf32> -> vector<32x128xf32>
    %c1_14 = arith.constant 1 : index
    %c0_15 = arith.constant 0 : index
    %c0_16 = arith.constant 0 : index
    %21 = vector.load %arg5[%c1_14, %c0_15, %c0_16] : memref<3x32x1xf32, #tpu.memory_space<vmem>>, vector<1x32x1xf32>
    %22 = vector.shape_cast %21 : vector<1x32x1xf32> to vector<32x1xf32>
    %23 = vector.broadcast %22 : vector<32x1xf32> to vector<32x128xf32>
    %24 = arith.addf %20, %23 : vector<32x128xf32>
    %25 = math.tanh %24 : vector<32x128xf32>
    %c2 = arith.constant 2 : index
    %c0_17 = arith.constant 0 : index
    %c0_18 = arith.constant 0 : index
    %26 = vector.load %arg4[%c2, %c0_17, %c0_18] : memref<3x32x32xf32, #tpu.memory_space<vmem>>, vector<1x32x32xf32>
    %27 = vector.shape_cast %26 : vector<1x32x32xf32> to vector<32x32xf32>
    %cst_19 = arith.constant dense<0.000000e+00> : vector<32x128xf32>
    %28 = tpu.matmul %27, %25, %cst_19 {dimension_numbers = #tpu.dot_dimension_numbers<[1], [0], [0], [1], [0, 0, 1, 1], [], []>} : vector<32x32xf32>, vector<32x128xf32>, vector<32x128xf32> -> vector<32x128xf32>
    %c2_20 = arith.constant 2 : index
    %c0_21 = arith.constant 0 : index
    %c0_22 = arith.constant 0 : index
    %29 = vector.load %arg5[%c2_20, %c0_21, %c0_22] : memref<3x32x1xf32, #tpu.memory_space<vmem>>, vector<1x32x1xf32>
    %30 = vector.shape_cast %29 : vector<1x32x1xf32> to vector<32x1xf32>
    %31 = vector.broadcast %30 : vector<32x1xf32> to vector<32x128xf32>
    %32 = arith.addf %28, %31 : vector<32x128xf32>
    %33 = math.tanh %32 : vector<32x128xf32>
    %c0_23 = arith.constant 0 : index
    %c0_24 = arith.constant 0 : index
    %34 = vector.load %arg6[%c0_23, %c0_24] : memref<32x1xf32, #tpu.memory_space<vmem>>, vector<32x1xf32>
    %35 = vector.broadcast %34 : vector<32x1xf32> to vector<32x128xf32>
    %36 = arith.mulf %35, %33 : vector<32x128xf32>
    %cst_25 = arith.constant dense<0.000000e+00> : vector<128xf32>
    %37 = vector.multi_reduction <add>, %36, %cst_25 [0] : vector<32x128xf32> to vector<128xf32>
    %38 = vector.shape_cast %37 : vector<128xf32> to vector<1x128xf32>
    %c0_26 = arith.constant 0 : index
    %39 = memref.load %arg7[%c0_26] : memref<1xf32, #tpu.memory_space<smem>>
    %40 = vector.broadcast %39 : f32 to vector<1x128xf32>
    %41 = arith.addf %38, %40 : vector<1x128xf32>
    %c0_27 = arith.constant 0 : index
    %c0_28 = arith.constant 0 : index
    %42 = vector.load %arg8[%c0_27, %c0_28] : memref<1x128xf32, #tpu.memory_space<vmem>>, vector<1x128xf32>
    tpu.vector_store %arg8[%c0_27, %c0_28], %41 {strides = array<i32>} : memref<1x128xf32, #tpu.memory_space<vmem>>, vector<1x128xf32>,
    return
  }
  func.func @transform_0(%arg0: i32) -> (i32, i32) {
    %c0_i32 = arith.constant 0 : i32
    %c0_i32_0 = arith.constant 0 : i32
    return %c0_i32, %arg0 : i32, i32
  }
  func.func @transform_1(%arg0: i32) -> (i32, i32) {
    %c0_i32 = arith.constant 0 : i32
    %c0_i32_0 = arith.constant 0 : i32
    %c0_i32_1 = arith.constant 0 : i32
    return %c0_i32, %c0_i32_0 : i32, i32
  }
  func.func @transform_2(%arg0: i32) -> (i32, i32) {
    %c0_i32 = arith.constant 0 : i32
    %c0_i32_0 = arith.constant 0 : i32
    %c0_i32_1 = arith.constant 0 : i32
    return %c0_i32, %c0_i32_0 : i32, i32
  }
  func.func @transform_3(%arg0: i32) -> (i32, i32, i32) {
    %c0_i32 = arith.constant 0 : i32
    %c0_i32_0 = arith.constant 0 : i32
    %c0_i32_1 = arith.constant 0 : i32
    %c0_i32_2 = arith.constant 0 : i32
    return %c0_i32, %c0_i32_0, %c0_i32_1 : i32, i32, i32
  }
  func.func @transform_4(%arg0: i32) -> (i32, i32, i32) {
    %c0_i32 = arith.constant 0 : i32
    %c0_i32_0 = arith.constant 0 : i32
    %c0_i32_1 = arith.constant 0 : i32
    %c0_i32_2 = arith.constant 0 : i32
    return %c0_i32, %c0_i32_0, %c0_i32_1 : i32, i32, i32
  }
  func.func @transform_5(%arg0: i32) -> (i32, i32) {
    %c0_i32 = arith.constant 0 : i32
    %c0_i32_0 = arith.constant 0 : i32
    %c0_i32_1 = arith.constant 0 : i32
    return %c0_i32, %c0_i32_0 : i32, i32
  }
  func.func @transform_6(%arg0: i32) -> i32 {
    %c0_i32 = arith.constant 0 : i32
    %c0_i32_0 = arith.constant 0 : i32
    return %c0_i32 : i32
  }
  func.func @transform_7(%arg0: i32) -> (i32, i32) {
    %c0_i32 = arith.constant 0 : i32
    %c0_i32_0 = arith.constant 0 : i32
    return %c0_i32, %arg0 : i32, i32
  }
}

</mosaic_0001>

<llo_original>
// kernel: tpu_custom_call.1
$region0: #{tpu_custom_call.1}
  #allocation0 [shape = 'u32[]', space=smem, size = 0x4, offset = 0x4, fixed_abs, tag = 'smem constant byte address 0x4 - core index']
  #allocation1 [shape = 'u32[144,128]{1,0:T(1,128)}', space=vmem, size = 0x12000, scoped, tag = 'internal scratch']
  #allocation2 [shape = 'f32[1]{0:T(128)S(6)}', space=smem, size = 0x200, scoped, tag = 'scoped memory for tpu_custom_call.1']
  %s0 = inlined_call_operand.vmem [shape: f32[1,128], index: 0, kind: input, shape index: {}]
  %s1 = inlined_call_operand.vmem [shape: f32[32,1], index: 1, kind: input, shape index: {}]
  %s2 = inlined_call_operand.vmem [shape: f32[32,1], index: 2, kind: input, shape index: {}]
  %s3 = inlined_call_operand.vmem [shape: f32[3,32,32], index: 3, kind: input, shape index: {}]
  %s4 = inlined_call_operand.vmem [shape: f32[3,32,1], index: 4, kind: input, shape index: {}]
  %s5 = inlined_call_operand.vmem [shape: f32[32,1], index: 5, kind: input, shape index: {}]
  %s6 = inlined_call_operand.<no memory space> [shape: f32[1], index: 6, kind: input, shape index: {}]
  %s7 = inlined_call_operand.hbm [shape: f32[1,128], index: 7, kind: output, shape index: {}]
  %s8 = sld [smem:[#allocation0]]
  $region38: #{tpu_custom_call.1} parent=0
    _
  %s10 = ssub.s32 1, %s8
  %s11 = scalar_select 0, %s10, %s8
  %12 = sst [smem:[#allocation2]] %s6
  $region1: #{tpu_custom_call.1} parent=0
    #allocation3 [shape = 'u8[512]{0}', space=vmem, size = 0x400, scoped, tag = 'output window, operand 0, single buffered']
    #allocation4 [shape = 's32[1]{0}', space=sflag, size = 0x4, scoped, tag = 'scoped memory for tpu_custom_call.1']
    %13 = vsyncpa [#allocation4], 0
    // Predicated region
    $region2: #{tpu_custom_call.1} parent=1 // pred_check
      _
    $region3: #{tpu_custom_call.1} parent=1 // pred_check_branch
      %15 = sbr.rel (0) target = $region5
    $region4: #{tpu_custom_call.1} parent=1 // pred_region
      _
    $region5: #{tpu_custom_call.1} parent=1 // pred_fallthru
      _
    // Predicated region
    $region6: #{tpu_custom_call.1} parent=1 // pred_check
      _
    $region7: #{tpu_custom_call.1} parent=1 // pred_check_branch
      %17 = sbr.rel (0) target = $region9
    $region8: #{tpu_custom_call.1} parent=1 // pred_region
      _
    $region9: #{tpu_custom_call.1} parent=1 // pred_fallthru
      _
    // Predicated region
    $region10: #{tpu_custom_call.1} parent=1 // pred_check
      _
    $region11: #{tpu_custom_call.1} parent=1 // pred_check_branch
      %19 = sbr.rel (0) target = $region13
    $region12: #{tpu_custom_call.1} parent=1 // pred_region
      _
    $region13: #{tpu_custom_call.1} parent=1 // pred_fallthru
      _
    // Predicated region
    $region14: #{tpu_custom_call.1} parent=1 // pred_check
      _
    $region15: #{tpu_custom_call.1} parent=1 // pred_check_branch
      %21 = sbr.rel (0) target = $region17
    $region16: #{tpu_custom_call.1} parent=1 // pred_region
      _
    $region17: #{tpu_custom_call.1} parent=1 // pred_fallthru
      _
    // Predicated region
    $region18: #{tpu_custom_call.1} parent=1 // pred_check
      _
    $region19: #{tpu_custom_call.1} parent=1 // pred_check_branch
      %23 = sbr.rel (0) target = $region21
    $region20: #{tpu_custom_call.1} parent=1 // pred_region
      _
    $region21: #{tpu_custom_call.1} parent=1 // pred_fallthru
      _
    // Predicated region
    $region22: #{tpu_custom_call.1} parent=1 // pred_check
      _
    $region23: #{tpu_custom_call.1} parent=1 // pred_check_branch
      %25 = sbr.rel (0) target = $region25
    $region24: #{tpu_custom_call.1} parent=1 // pred_region
      _
    $region25: #{tpu_custom_call.1} parent=1 // pred_fallthru
      _
    // Predicated region
    $region26: #{tpu_custom_call.1} parent=1 // pred_check
      _
    $region27: #{tpu_custom_call.1} parent=1 // pred_check_branch
      %27 = sbr.rel (0) target = $region29
    $region28: #{tpu_custom_call.1} parent=1 // pred_region
      _
    $region29: #{tpu_custom_call.1} parent=1 // pred_fallthru
      _
    %v28 = vld [vmem:[%s0] sm:$0x1]
    %v29 = vld [vmem:[%s1] sm:$0xff]
    %v30 = vld [vmem:[%s1 + $0x8] sm:$0xff]
    %v31 = vld [vmem:[%s1 + $0x10] sm:$0xff]
    %v32 = vld [vmem:[%s1 + $0x18] sm:$0xff]
    %34 = vset.pattern.permute.xlu0 0
    %35 = vperm.xlu0 %34, %v29
    %v36 = vpop.permute.xlu0 %35
    %39 = vset.pattern.permute.xlu0 0
    %40 = vperm.xlu0 %39, %v30
    %v41 = vpop.permute.xlu0 %40
    %44 = vset.pattern.permute.xlu0 0
    %45 = vperm.xlu0 %44, %v31
    %v46 = vpop.permute.xlu0 %45
    %49 = vset.pattern.permute.xlu0 0
    %50 = vperm.xlu0 %49, %v32
    %v51 = vpop.permute.xlu0 %50
    %v54 = vlaneseq
    %v55 = vshrl.u32 %v54, 7
    %v56 = vsub.s32 0, %v55
    %v57 = vrot.slane %v28, %v56
    %v59 = vmul.f32 %v36, %v57
    %v60 = vmul.f32 %v41, %v57
    %v61 = vmul.f32 %v46, %v57
    %v62 = vmul.f32 %v51, %v57
    %v63 = vld [vmem:[%s2] sm:$0xff]
    %v64 = vld [vmem:[%s2 + $0x8] sm:$0xff]
    %v65 = vld [vmem:[%s2 + $0x10] sm:$0xff]
    %v66 = vld [vmem:[%s2 + $0x18] sm:$0xff]
    %68 = vset.pattern.permute.xlu0 0
    %69 = vperm.xlu0 %68, %v63
    %v70 = vpop.permute.xlu0 %69
    %73 = vset.pattern.permute.xlu0 0
    %74 = vperm.xlu0 %73, %v64
    %v75 = vpop.permute.xlu0 %74
    %78 = vset.pattern.permute.xlu0 0
    %79 = vperm.xlu0 %78, %v65
    %v80 = vpop.permute.xlu0 %79
    %83 = vset.pattern.permute.xlu0 0
    %84 = vperm.xlu0 %83, %v66
    %v85 = vpop.permute.xlu0 %84
    %v87 = vadd.f32 %v59, %v70
    %v88 = vadd.f32 %v60, %v75
    %v89 = vadd.f32 %v61, %v80
    %v90 = vadd.f32 %v62, %v85
    %v91 = vtanh.pop %v87
    %v92 = vtanh.pop %v88
    %v93 = vtanh.pop %v89
    %v94 = vtanh.pop %v90
    %v95 = vmul.f32 %v87, %v91
    %v96 = vmul.f32 %v88, %v92
    %v97 = vmul.f32 %v89, %v93
    %v98 = vmul.f32 %v90, %v94
    %v99 = vld [vmem:[%s3] sm:$0xff]
    %v100 = vld [vmem:[%s3 + $0x8] sm:$0xff]
    %v101 = vld [vmem:[%s3 + $0x10] sm:$0xff]
    %v102 = vld [vmem:[%s3 + $0x18] sm:$0xff]
    %v103 = vld [vmem:[%s4] sm:$0xff]
    %v104 = vld [vmem:[%s4 + $0x8] sm:$0xff]
    %v105 = vld [vmem:[%s4 + $0x10] sm:$0xff]
    %v106 = vld [vmem:[%s4 + $0x18] sm:$0xff]
    %108 = vset.pattern.permute.xlu0 0
    %109 = vperm.xlu0 %108, %v103
    %v110 = vpop.permute.xlu0 %109
    %113 = vset.pattern.permute.xlu0 0
    %114 = vperm.xlu0 %113, %v104
    %v115 = vpop.permute.xlu0 %114
    %118 = vset.pattern.permute.xlu0 0
    %119 = vperm.xlu0 %118, %v105
    %v120 = vpop.permute.xlu0 %119
    %123 = vset.pattern.permute.xlu0 0
    %124 = vperm.xlu0 %123, %v106
    %v125 = vpop.permute.xlu0 %124
    %vm127 = vcmask 261120
    %v129 = vsel %vm127, %v99, 0
    %v132 = vsel %vm127, %v100, 0
    %v135 = vsel %vm127, %v101, 0
    %v138 = vsel %vm127, %v102, 0
    %140 = vmatprep.subr.mxu0 0.0
    %141 = vmatpush1.msra.mxu0 %v95
    %142 = vmatprep.subr.mxu0 0.0
    %143 = vmatpush1.msra.mxu0 %v96
    %144 = vmatprep.subr.mxu0 0.0
    %145 = vmatpush1.msra.mxu0 %v97
    %146 = vmatprep.subr.mxu0 0.0
    %147 = vmatpush1.msra.mxu0 %v98
    %148 = vmatprep.subr.mxu0 0.0
    %149 = vmatpush1.msra.mxu0 0.0
    %150 = vmatprep.subr.mxu0 0.0
    %151 = vmatpush1.msra.mxu0 0.0
    %152 = vmatprep.subr.mxu0 0.0
    %153 = vmatpush1.msra.mxu0 0.0
    %154 = vmatprep.subr.mxu0 0.0
    %155 = vmatpush1.msra.mxu0 0.0
    %156 = vmatprep.subr.mxu0 0.0
    %157 = vmatpush1.msra.mxu0 0.0
    %158 = vmatprep.subr.mxu0 0.0
    %159 = vmatpush1.msra.mxu0 0.0
    %160 = vmatprep.subr.mxu0 0.0
    %161 = vmatpush1.msra.mxu0 0.0
    %162 = vmatprep.subr.mxu0 0.0
    %163 = vmatpush1.msra.mxu0 0.0
    %164 = vmatprep.subr.mxu0 0.0
    %165 = vmatpush1.msra.mxu0 0.0
    %166 = vmatprep.subr.mxu0 0.0
    %167 = vmatpush1.msra.mxu0 0.0
    %168 = vmatprep.subr.mxu0 0.0
    %169 = vmatpush1.msra.mxu0 0.0
    %170 = vmatprep.subr.mxu0 0.0
    %171 = vmatpush1.msra.mxu0 0.0
    %172 = vmatprep.subr.mxu0 0.0
    %173 = vmatpush1.msra.mxu0 0.0
    %174 = vmatprep.subr.mxu0 0.0
    %175 = vmatpush1.msra.mxu0 0.0
    %176 = vmatprep.subr.mxu0 0.0
    %177 = vmatpush1.msra.mxu0 0.0
    %178 = vmatprep.subr.mxu0 0.0
    %179 = vmatpush1.msra.mxu0 0.0
    %180 = vmatprep.subr.mxu0 0.0
    %181 = vmatpush1.msra.mxu0 0.0
    %182 = vmatprep.subr.mxu0 0.0
    %183 = vmatpush1.msra.mxu0 0.0
    %184 = vmatprep.subr.mxu0 0.0
    %185 = vmatpush1.msra.mxu0 0.0
    %186 = vmatprep.subr.mxu0 0.0
    %187 = vmatpush1.msra.mxu0 0.0
    %188 = vmatprep.subr.mxu0 0.0
    %189 = vmatpush1.msra.mxu0 0.0
    %190 = vmatprep.subr.mxu0 0.0
    %191 = vmatpush1.msra.mxu0 0.0
    %192 = vmatprep.subr.mxu0 0.0
    %193 = vmatpush1.msra.mxu0 0.0
    %194 = vmatprep.subr.mxu0 0.0
    %195 = vmatpush1.msra.mxu0 0.0
    %196 = vmatprep.subr.mxu0 0.0
    %197 = vmatpush1.msra.mxu0 0.0
    %198 = vmatprep.subr.mxu0 0.0
    %199 = vmatpush1.msra.mxu0 0.0
    %200 = vmatprep.subr.mxu0 0.0
    %201 = vmatpush1.msra.mxu0 0.0
    %202 = vmatprep.subr.mxu0 0.0
    %203 = vmatpush1.msra.mxu0 0.0
    %204 = vmatprep.mubr.f32.mxu0 0.0
    %205 = vmatmul.mubr.f32.gmra.mrb[0].mxu0 %v129
    %v206 = vpop.f32.mrb[0].mxu0
    %v207 = vadd.f32 %v110, %v206
    %v208 = vpop.f32.mrb[0].mxu0
    %209 = vmatprep.mubr.f32.mxu0 0.0
    %210 = vmatmul.mubr.f32.gmra.mrb[0].mxu0 %v132
    %v211 = vpop.f32.mrb[0].mxu0
    %v212 = vadd.f32 %v115, %v211
    %v213 = vpop.f32.mrb[0].mxu0
    %214 = vmatprep.mubr.f32.mxu0 0.0
    %215 = vmatmul.mubr.f32.gmra.mrb[0].mxu0 %v135
    %v216 = vpop.f32.mrb[0].mxu0
    %v217 = vadd.f32 %v120, %v216
    %v218 = vpop.f32.mrb[0].mxu0
    %219 = vmatprep.mubr.f32.mxu0 0.0
    %220 = vmatmul.mubr.f32.gmra.mrb[0].mxu0 %v138
    %v221 = vpop.f32.mrb[0].mxu0
    %v222 = vadd.f32 %v125, %v221
    %v223 = vpop.f32.mrb[0].mxu0
    %224 = vdwg.mxu0
    %v225 = vtanh.pop %v207
    %v226 = vtanh.pop %v212
    %v227 = vtanh.pop %v217
    %v228 = vtanh.pop %v222
    %s229 = scalar_lea.vmem %s3, 32
    %v230 = vld [vmem:[%s229] sm:$0xff]
    %v231 = vld [vmem:[%s229 + $0x8] sm:$0xff]
    %v232 = vld [vmem:[%s229 + $0x10] sm:$0xff]
    %v233 = vld [vmem:[%s229 + $0x18] sm:$0xff]
    %s234 = scalar_lea.vmem %s4, 32
    %v235 = vld [vmem:[%s234] sm:$0xff]
    %v236 = vld [vmem:[%s234 + $0x8] sm:$0xff]
    %v237 = vld [vmem:[%s234 + $0x10] sm:$0xff]
    %v238 = vld [vmem:[%s234 + $0x18] sm:$0xff]
    %240 = vset.pattern.permute.xlu0 0
    %241 = vperm.xlu0 %240, %v235
    %v242 = vpop.permute.xlu0 %241
    %245 = vset.pattern.permute.xlu0 0
    %246 = vperm.xlu0 %245, %v236
    %v247 = vpop.permute.xlu0 %246
    %250 = vset.pattern.permute.xlu0 0
    %251 = vperm.xlu0 %250, %v237
    %v252 = vpop.permute.xlu0 %251
    %255 = vset.pattern.permute.xlu0 0
    %256 = vperm.xlu0 %255, %v238
    %v257 = vpop.permute.xlu0 %256
    %v260 = vsel %vm127, %v230, 0
    %v263 = vsel %vm127, %v231, 0
    %v266 = vsel %vm127, %v232, 0
    %v269 = vsel %vm127, %v233, 0
    %271 = vmatprep.subr.mxu0 0.0
    %272 = vmatpush1.msra.mxu0 %v225
    %273 = vmatprep.subr.mxu0 0.0
    %274 = vmatpush1.msra.mxu0 %v226
    %275 = vmatprep.subr.mxu0 0.0
    %276 = vmatpush1.msra.mxu0 %v227
    %277 = vmatprep.subr.mxu0 0.0
    %278 = vmatpush1.msra.mxu0 %v228
    %279 = vmatprep.subr.mxu0 0.0
    %280 = vmatpush1.msra.mxu0 0.0
    %281 = vmatprep.subr.mxu0 0.0
    %282 = vmatpush1.msra.mxu0 0.0
    %283 = vmatprep.subr.mxu0 0.0
    %284 = vmatpush1.msra.mxu0 0.0
    %285 = vmatprep.subr.mxu0 0.0
    %286 = vmatpush1.msra.mxu0 0.0
    %287 = vmatprep.subr.mxu0 0.0
    %288 = vmatpush1.msra.mxu0 0.0
    %289 = vmatprep.subr.mxu0 0.0
    %290 = vmatpush1.msra.mxu0 0.0
    %291 = vmatprep.subr.mxu0 0.0
    %292 = vmatpush1.msra.mxu0 0.0
    %293 = vmatprep.subr.mxu0 0.0
    %294 = vmatpush1.msra.mxu0 0.0
    %295 = vmatprep.subr.mxu0 0.0
    %296 = vmatpush1.msra.mxu0 0.0
    %297 = vmatprep.subr.mxu0 0.0
    %298 = vmatpush1.msra.mxu0 0.0
    %299 = vmatprep.subr.mxu0 0.0
    %300 = vmatpush1.msra.mxu0 0.0
    %301 = vmatprep.subr.mxu0 0.0
    %302 = vmatpush1.msra.mxu0 0.0
    %303 = vmatprep.subr.mxu0 0.0
    %304 = vmatpush1.msra.mxu0 0.0
    %305 = vmatprep.subr.mxu0 0.0
    %306 = vmatpush1.msra.mxu0 0.0
    %307 = vmatprep.subr.mxu0 0.0
    %308 = vmatpush1.msra.mxu0 0.0
    %309 = vmatprep.subr.mxu0 0.0
    %310 = vmatpush1.msra.mxu0 0.0
    %311 = vmatprep.subr.mxu0 0.0
    %312 = vmatpush1.msra.mxu0 0.0
    %313 = vmatprep.subr.mxu0 0.0
    %314 = vmatpush1.msra.mxu0 0.0
    %315 = vmatprep.subr.mxu0 0.0
    %316 = vmatpush1.msra.mxu0 0.0
    %317 = vmatprep.subr.mxu0 0.0
    %318 = vmatpush1.msra.mxu0 0.0
    %319 = vmatprep.subr.mxu0 0.0
    %320 = vmatpush1.msra.mxu0 0.0
    %321 = vmatprep.subr.mxu0 0.0
    %322 = vmatpush1.msra.mxu0 0.0
    %323 = vmatprep.subr.mxu0 0.0
    %324 = vmatpush1.msra.mxu0 0.0
    %325 = vmatprep.subr.mxu0 0.0
    %326 = vmatpush1.msra.mxu0 0.0
    %327 = vmatprep.subr.mxu0 0.0
    %328 = vmatpush1.msra.mxu0 0.0
    %329 = vmatprep.subr.mxu0 0.0
    %330 = vmatpush1.msra.mxu0 0.0
    %331 = vmatprep.subr.mxu0 0.0
    %332 = vmatpush1.msra.mxu0 0.0
    %333 = vmatprep.subr.mxu0 0.0
    %334 = vmatpush1.msra.mxu0 0.0
    %335 = vmatprep.mubr.f32.mxu0 0.0
    %336 = vmatmul.mubr.f32.gmra.mrb[0].mxu0 %v260
    %v337 = vpop.f32.mrb[0].mxu0
    %v338 = vadd.f32 %v242, %v337
    %v339 = vpop.f32.mrb[0].mxu0
    %340 = vmatprep.mubr.f32.mxu0 0.0
    %341 = vmatmul.mubr.f32.gmra.mrb[0].mxu0 %v263
    %v342 = vpop.f32.mrb[0].mxu0
    %v343 = vadd.f32 %v247, %v342
    %v344 = vpop.f32.mrb[0].mxu0
    %345 = vmatprep.mubr.f32.mxu0 0.0
    %346 = vmatmul.mubr.f32.gmra.mrb[0].mxu0 %v266
    %v347 = vpop.f32.mrb[0].mxu0
    %v348 = vadd.f32 %v252, %v347
    %v349 = vpop.f32.mrb[0].mxu0
    %350 = vmatprep.mubr.f32.mxu0 0.0
    %351 = vmatmul.mubr.f32.gmra.mrb[0].mxu0 %v269
    %v352 = vpop.f32.mrb[0].mxu0
    %v353 = vadd.f32 %v257, %v352
    %v354 = vpop.f32.mrb[0].mxu0
    %355 = vdwg.mxu0
    %v356 = vtanh.pop %v338
    %v357 = vtanh.pop %v343
    %v358 = vtanh.pop %v348
    %v359 = vtanh.pop %v353
    %s360 = scalar_lea.vmem %s3, 64
    %v361 = vld [vmem:[%s360] sm:$0xff]
    %v362 = vld [vmem:[%s360 + $0x8] sm:$0xff]
    %v363 = vld [vmem:[%s360 + $0x10] sm:$0xff]
    %v364 = vld [vmem:[%s360 + $0x18] sm:$0xff]
    %s365 = scalar_lea.vmem %s4, 64
    %v366 = vld [vmem:[%s365] sm:$0xff]
    %v367 = vld [vmem:[%s365 + $0x8] sm:$0xff]
    %v368 = vld [vmem:[%s365 + $0x10] sm:$0xff]
    %v369 = vld [vmem:[%s365 + $0x18] sm:$0xff]
    %371 = vset.pattern.permute.xlu0 0
    %372 = vperm.xlu0 %371, %v366
    %v373 = vpop.permute.xlu0 %372
    %376 = vset.pattern.permute.xlu0 0
    %377 = vperm.xlu0 %376, %v367
    %v378 = vpop.permute.xlu0 %377
    %381 = vset.pattern.permute.xlu0 0
    %382 = vperm.xlu0 %381, %v368
    %v383 = vpop.permute.xlu0 %382
    %386 = vset.pattern.permute.xlu0 0
    %387 = vperm.xlu0 %386, %v369
    %v388 = vpop.permute.xlu0 %387
    %v391 = vsel %vm127, %v361, 0
    %v394 = vsel %vm127, %v362, 0
    %v397 = vsel %vm127, %v363, 0
    %v400 = vsel %vm127, %v364, 0
    %402 = vmatprep.subr.mxu0 0.0
    %403 = vmatpush1.msra.mxu0 %v356
    %404 = vmatprep.subr.mxu0 0.0
    %405 = vmatpush1.msra.mxu0 %v357
    %406 = vmatprep.subr.mxu0 0.0
    %407 = vmatpush1.msra.mxu0 %v358
    %408 = vmatprep.subr.mxu0 0.0
    %409 = vmatpush1.msra.mxu0 %v359
    %410 = vmatprep.subr.mxu0 0.0
    %411 = vmatpush1.msra.mxu0 0.0
    %412 = vmatprep.subr.mxu0 0.0
    %413 = vmatpush1.msra.mxu0 0.0
    %414 = vmatprep.subr.mxu0 0.0
    %415 = vmatpush1.msra.mxu0 0.0
    %416 = vmatprep.subr.mxu0 0.0
    %417 = vmatpush1.msra.mxu0 0.0
    %418 = vmatprep.subr.mxu0 0.0
    %419 = vmatpush1.msra.mxu0 0.0
    %420 = vmatprep.subr.mxu0 0.0
    %421 = vmatpush1.msra.mxu0 0.0
    %422 = vmatprep.subr.mxu0 0.0
    %423 = vmatpush1.msra.mxu0 0.0
    %424 = vmatprep.subr.mxu0 0.0
    %425 = vmatpush1.msra.mxu0 0.0
    %426 = vmatprep.subr.mxu0 0.0
    %427 = vmatpush1.msra.mxu0 0.0
    %428 = vmatprep.subr.mxu0 0.0
    %429 = vmatpush1.msra.mxu0 0.0
    %430 = vmatprep.subr.mxu0 0.0
    %431 = vmatpush1.msra.mxu0 0.0
    %432 = vmatprep.subr.mxu0 0.0
    %433 = vmatpush1.msra.mxu0 0.0
    %434 = vmatprep.subr.mxu0 0.0
    %435 = vmatpush1.msra.mxu0 0.0
    %436 = vmatprep.subr.mxu0 0.0
    %437 = vmatpush1.msra.mxu0 0.0
    %438 = vmatprep.subr.mxu0 0.0
    %439 = vmatpush1.msra.mxu0 0.0
    %440 = vmatprep.subr.mxu0 0.0
    %441 = vmatpush1.msra.mxu0 0.0
    %442 = vmatprep.subr.mxu0 0.0
    %443 = vmatpush1.msra.mxu0 0.0
    %444 = vmatprep.subr.mxu0 0.0
    %445 = vmatpush1.msra.mxu0 0.0
    %446 = vmatprep.subr.mxu0 0.0
    %447 = vmatpush1.msra.mxu0 0.0
    %448 = vmatprep.subr.mxu0 0.0
    %449 = vmatpush1.msra.mxu0 0.0
    %450 = vmatprep.subr.mxu0 0.0
    %451 = vmatpush1.msra.mxu0 0.0
    %452 = vmatprep.subr.mxu0 0.0
    %453 = vmatpush1.msra.mxu0 0.0
    %454 = vmatprep.subr.mxu0 0.0
    %455 = vmatpush1.msra.mxu0 0.0
    %456 = vmatprep.subr.mxu0 0.0
    %457 = vmatpush1.msra.mxu0 0.0
    %458 = vmatprep.subr.mxu0 0.0
    %459 = vmatpush1.msra.mxu0 0.0
    %460 = vmatprep.subr.mxu0 0.0
    %461 = vmatpush1.msra.mxu0 0.0
    %462 = vmatprep.subr.mxu0 0.0
    %463 = vmatpush1.msra.mxu0 0.0
    %464 = vmatprep.subr.mxu0 0.0
    %465 = vmatpush1.msra.mxu0 0.0
    %466 = vmatprep.mubr.f32.mxu0 0.0
    %467 = vmatmul.mubr.f32.gmra.mrb[0].mxu0 %v391
    %v468 = vpop.f32.mrb[0].mxu0
    %v469 = vadd.f32 %v373, %v468
    %v470 = vpop.f32.mrb[0].mxu0
    %471 = vmatprep.mubr.f32.mxu0 0.0
    %472 = vmatmul.mubr.f32.gmra.mrb[0].mxu0 %v394
    %v473 = vpop.f32.mrb[0].mxu0
    %v474 = vadd.f32 %v378, %v473
    %v475 = vpop.f32.mrb[0].mxu0
    %476 = vmatprep.mubr.f32.mxu0 0.0
    %477 = vmatmul.mubr.f32.gmra.mrb[0].mxu0 %v397
    %v478 = vpop.f32.mrb[0].mxu0
    %v479 = vadd.f32 %v383, %v478
    %v480 = vpop.f32.mrb[0].mxu0
    %481 = vmatprep.mubr.f32.mxu0 0.0
    %482 = vmatmul.mubr.f32.gmra.mrb[0].mxu0 %v400
    %v483 = vpop.f32.mrb[0].mxu0
    %v484 = vadd.f32 %v388, %v483
    %v485 = vpop.f32.mrb[0].mxu0
    %486 = vdwg.mxu0
    %v487 = vtanh.pop %v469
    %v488 = vtanh.pop %v474
    %v489 = vtanh.pop %v479
    %v490 = vtanh.pop %v484
    %v491 = vld [vmem:[%s5] sm:$0xff]
    %v492 = vld [vmem:[%s5 + $0x8] sm:$0xff]
    %v493 = vld [vmem:[%s5 + $0x10] sm:$0xff]
    %v494 = vld [vmem:[%s5 + $0x18] sm:$0xff]
    %496 = vset.pattern.permute.xlu0 0
    %497 = vperm.xlu0 %496, %v491
    %v498 = vpop.permute.xlu0 %497
    %501 = vset.pattern.permute.xlu0 0
    %502 = vperm.xlu0 %501, %v492
    %v503 = vpop.permute.xlu0 %502
    %506 = vset.pattern.permute.xlu0 0
    %507 = vperm.xlu0 %506, %v493
    %v508 = vpop.permute.xlu0 %507
    %511 = vset.pattern.permute.xlu0 0
    %512 = vperm.xlu0 %511, %v494
    %v513 = vpop.permute.xlu0 %512
    %v515 = vmul.f32 %v498, %v487
    %v516 = vmul.f32 %v503, %v488
    %v517 = vmul.f32 %v508, %v489
    %v518 = vmul.f32 %v513, %v490
    %v519 = vadd.f32 %v515, %v516
    %v520 = vadd.f32 %v519, %v517
    %v521 = vadd.f32 %v520, %v518
    %v522 = vrot.slane %v521, 4
    %v523 = vadd.f32 %v521, %v522
    %v524 = vrot.slane %v523, 2
    %v525 = vadd.f32 %v523, %v524
    %v526 = vrot.slane %v525, 1
    %v527 = vadd.f32 %v525, %v526
    %s528 = sld [smem:[#allocation2]]
    %v529 = vstv %s528
    %v530 = vadd.f32 %v527, %v529
    %531 = vst [vmem:[#allocation3] sm:$0x1] %v530
    // Predicated region
    $region30: #{tpu_custom_call.1} parent=1 // pred_check
      _
    $region31: #{tpu_custom_call.1} parent=1 // pred_check_branch
      %533 = sbr.rel (0) target = $region33
    $region32: #{tpu_custom_call.1} parent=1 // pred_region
      %s535 = ssub.s32 16, 16
      %536 = vsyncadd [#allocation4], %s535
      %s538 = sshll.u32 [#allocation3], 4
      %s539 = int_to_ptr.vmem [resolvable:$true] %s538
      %541 = dma.vmem_to_hbm [thread:$0]  %s539, 16, %s7, [#allocation4]
    $region33: #{tpu_custom_call.1} parent=1 // pred_fallthru
      _
    // Predicated region
    $region34: #{tpu_custom_call.1} parent=1 // pred_check
      _
    $region35: #{tpu_custom_call.1} parent=1 // pred_check_branch
      %543 = sbr.rel (0) target = $region37
    $region36: #{tpu_custom_call.1} parent=1 // pred_region
      %544 = dma.done [#allocation4], 16
    $region37: #{tpu_custom_call.1} parent=1 // pred_fallthru
      _
    %545 = vsyncpa [#allocation4], 1

</llo_original>
